<compile_context>
chip_gen: v7x
topology: tpu7x:2x2x1
jax: 0.10.0
libtpu: 0.0.40
codegen_flags: <defaults>
</compile_context>

<pallas_src>
import functools

import jax
import jax.numpy as jnp
import numpy as np
from jax.experimental import pallas as pl
from jax.experimental.pallas import tpu as pltpu

_MIB = 1024 * 1024


# ----------------------------------------------------------------------------
# Generation-aware budgets
# ----------------------------------------------------------------------------
def _tpu_vmem_bytes():
    """Physical VMEM per core; falls back to 128 MiB if the query fails."""
    try:
        return int(pltpu.get_tpu_info().vmem_capacity_bytes)
    except Exception:
        return 128 * _MIB


def _budgets(itemsize):
    """Return (block_byte_budget_in_x_dtype, vmem_limit_cap)."""
    vmem = _tpu_vmem_bytes()
    # Per-step footprint ~= 2x double-buffered input + 2x double-buffered
    # output (x dtype) + ~3 f32-sized working copies (upcast, temporaries,
    # expanded affine).  Solve for the block size that keeps the total well
    # inside physical VMEM (v7x: ~5 MiB blocks, v5e/v6e: ~10 MiB for f32).
    mult = 4.0 + 3.0 * (4.0 / itemsize)
    block_budget = max(_MIB, int(vmem * 0.55 / mult))
    vmem_cap = min(100 * _MIB, int(vmem * 0.85))
    return block_budget, vmem_cap


def _vmem_limit(footprint_bytes, vmem_cap):
    return int(min(vmem_cap, max(32 * _MIB, footprint_bytes + 2 * _MIB)))


# ----------------------------------------------------------------------------
# In-kernel per-channel affine expansion (compact (rows, cpg) -> (rows, L))
# ----------------------------------------------------------------------------
def _affine_expand(w, b, lane, hw, cpg):
    """Expand per-channel params along the lane axis.

    Channel c owns lanes [c*hw, (c+1)*hw) of a group's L axis; `lane` carries
    the global lane index.  Monotone cascade: one compare + two selects per
    channel boundary.  Pure VPU -- no gathers, reshapes, or HBM broadcasts.
    """
    w_exp = jnp.broadcast_to(w[:, 0:1], lane.shape).astype(jnp.float32)
    b_exp = jnp.broadcast_to(b[:, 0:1], lane.shape).astype(jnp.float32)
    for c in range(1, cpg):
        m = lane >= c * hw
        w_exp = jnp.where(m, w[:, c:c + 1], w_exp)
        b_exp = jnp.where(m, b[:, c:c + 1], b_exp)
    return w_exp, b_exp


# ----------------------------------------------------------------------------
# Resident path: whole (bn, gt, L) rows live in one VMEM block (2x HBM traffic)
# ----------------------------------------------------------------------------
def _gn_resident_kernel(x_ref, w_ref, b_ref, o_ref, *, hw, cpg, eps, inv_l):
    x = x_ref[...].astype(jnp.float32)                    # (bn, gt, L)
    # Single sweep: E[x] and E[x^2] in f32.  max(var, 0) keeps rsqrt finite
    # both against rounding and against garbage-padded tail rows (N % bn != 0);
    # padded rows are dropped on writeback, so their values never matter.
    mean = jnp.sum(x, axis=-1, keepdims=True) * inv_l
    var = jnp.sum(x * x, axis=-1, keepdims=True) * inv_l - mean * mean
    rstd = jax.lax.rsqrt(jnp.maximum(var, 0.0) + eps)

    lane = jax.lax.broadcasted_iota(jnp.int32, (x.shape[1], x.shape[2]), 1)
    w_exp, b_exp = _affine_expand(w_ref[...], b_ref[...], lane, hw, cpg)

    y = (x - mean) * rstd * w_exp[None, :, :] + b_exp[None, :, :]
    o_ref[...] = y.astype(o_ref.dtype)


# ----------------------------------------------------------------------------
# Tiled fallback for very large L (3x HBM traffic, VMEM bounded)
# ----------------------------------------------------------------------------
def _gn_stats_kernel(x_ref, sum_ref, sq_ref, *, L, lt, num_l):
    li = pl.program_id(2)

    @pl.when(li == 0)
    def _init():
        sum_ref[...] = jnp.zeros_like(sum_ref)
        sq_ref[...] = jnp.zeros_like(sq_ref)

    x = x_ref[...].astype(jnp.float32)                    # (1, gt, lt)
    # TODO(synk): E[x^2]-E[x]^2 in f32 can lose precision for huge L with a
    # large mean/std ratio; switch to a shifted sum-of-squares if that matters.

    def _accum(v):
        sum_ref[...] += jnp.sum(v, axis=-1, keepdims=True)
        sq_ref[...] += jnp.sum(v * v, axis=-1, keepdims=True)

    if L % lt != 0:
        # Only the final chunk can hold out-of-bounds lanes: keep every other
        # chunk on an unmasked fast path (no iota/compare/select per element).
        @pl.when(li == num_l - 1)
        def _tail():
            lane = jax.lax.broadcasted_iota(jnp.int32, x.shape, 2) + li * lt
            _accum(jnp.where(lane < L, x, 0.0))

        @pl.when(li != num_l - 1)
        def _body():
            _accum(x)
    else:
        _accum(x)


def _gn_apply_kernel(x_ref, sum_ref, sq_ref, w_ref, b_ref, o_ref, *,
                     inv_l, lt, hw, cpg, eps):
    li = pl.program_id(2)
    x = x_ref[...].astype(jnp.float32)                    # (1, gt, lt)
    mean = sum_ref[...] * inv_l                           # (1, gt, 1)
    var = sq_ref[...] * inv_l - mean * mean
    rstd = jax.lax.rsqrt(jnp.maximum(var, 0.0) + eps)

    lane = (jax.lax.broadcasted_iota(jnp.int32, (x.shape[1], x.shape[2]), 1)
            + li * lt)
    w_exp, b_exp = _affine_expand(w_ref[...], b_ref[...], lane, hw, cpg)

    y = (x - mean) * rstd * w_exp[None, :, :] + b_exp[None, :, :]
    # OOB tail lanes (L % lt != 0) hold garbage that writeback simply drops.
    o_ref[...] = y.astype(o_ref.dtype)


# ----------------------------------------------------------------------------
# Tile selection + wrapper
# ----------------------------------------------------------------------------
def _pick_resident_tiles(N, G, L, itemsize, budget, sub):
    row_bytes = L * itemsize
    divs = [d for d in range(G, 0, -1)
            if G % d == 0 and (d == G or d % sub == 0)]
    gt = next((d for d in divs if d * row_bytes <= budget), divs[-1])
    bn = max(1, min(N, budget // max(1, gt * row_bytes)))
    # Expose >= 2 grid steps when the shape allows it so v7x's second
    # TensorCore gets work; on single-TC v5e/v6e this only costs ~0.35 us.
    if (G // gt) * pl.cdiv(N, bn) < 2:
        smaller = [d for d in divs if d < gt]
        if smaller:
            gt = smaller[0]
            bn = max(1, min(N, budget // max(1, gt * row_bytes)))
        elif N > 1:
            bn = pl.cdiv(N, 2)
    return int(bn), int(gt)


def group_norm(x, weight, bias, num_groups=32, eps=1e-5, *,
               max_block_bytes=None):
    """GroupNorm forward. x: (N, C, H, W); weight/bias: (C,).

    max_block_bytes=None picks a generation-aware block budget from the real
    VMEM size (v7x ~5 MiB, v5e/v6e ~10 MiB for f32).
    """
    N, C, H, W = x.shape
    G = num_groups
    assert C % G == 0, "num_features must be divisible by num_groups"
    cpg = C // G
    hw = H * W
    L = cpg * hw
    itemsize = jnp.dtype(x.dtype).itemsize
    sub = max(8, 32 // itemsize)          # sublane pack: f32->8, bf16->16, i8->32

    budget, vmem_cap = _budgets(itemsize)
    if max_block_bytes is not None:
        budget = int(max_block_bytes)

    x_g = x.reshape(N, G, L)                          # free metadata reshape
    w_g = weight.astype(jnp.float32).reshape(G, cpg)  # compact affine params
    b_g = bias.astype(jnp.float32).reshape(G, cpg)

    min_gt = sub if G % sub == 0 else G
    resident = min_gt * L * itemsize <= budget

    if resident:
        bn, gt = _pick_resident_tiles(N, G, L, itemsize, budget, sub)
        blk = bn * gt * L
        # 2x dbuf in + 2x dbuf out + ~3 f32 working copies + affine expand.
        footprint = 4 * blk * itemsize + 3 * blk * 4 + 2 * gt * L * 4
        kernel = functools.partial(_gn_resident_kernel, hw=hw, cpg=cpg,
                                   eps=eps, inv_l=1.0 / L)
        out = pl.pallas_call(
            kernel,
            out_shape=jax.ShapeDtypeStruct((N, G, L), x.dtype),
            grid=(G // gt, pl.cdiv(N, bn)),           # g outer: w/b DMA'd once/g-block
            in_specs=[
                pl.BlockSpec((bn, gt, L), lambda g, n: (n, g, 0)),
                pl.BlockSpec((gt, cpg), lambda g, n: (g, 0)),
                pl.BlockSpec((gt, cpg), lambda g, n: (g, 0)),
            ],
            out_specs=pl.BlockSpec((bn, gt, L), lambda g, n: (n, g, 0)),
            compiler_params=pltpu.CompilerParams(
                dimension_semantics=("parallel", "parallel"),
                vmem_limit_bytes=_vmem_limit(footprint, vmem_cap),
            ),
        )(x_g, w_g, b_g)
        return out.reshape(N, C, H, W)

    # ---- tiled fallback: bound VMEM for very large L ----
    # Split G across a parallel grid axis when legal so both v7x TensorCores
    # get work even at N=1; L (reduction for stats) stays the last axis.
    gt_f = G
    if G % 2 == 0 and (G // 2) % sub == 0:
        gt_f = G // 2

    l_pad = pl.cdiv(L, 128) * 128
    lt_apply = max(128, (budget // max(1, gt_f * itemsize)) // 128 * 128)
    lt_apply = min(lt_apply, l_pad)
    lt_stats = min(2 * lt_apply, l_pad)   # stats pass has no large output block
    nl_stats = pl.cdiv(L, lt_stats)
    nl_apply = pl.cdiv(L, lt_apply)

    stats = functools.partial(_gn_stats_kernel, L=L, lt=lt_stats,
                              num_l=nl_stats)
    fp_stats = 2 * gt_f * lt_stats * itemsize + 2 * gt_f * lt_stats * 4
    ssum, ssq = pl.pallas_call(
        stats,
        out_shape=(jax.ShapeDtypeStruct((N, G, 1), jnp.float32),
                   jax.ShapeDtypeStruct((N, G, 1), jnp.float32)),
        grid=(N, G // gt_f, nl_stats),
        in_specs=[pl.BlockSpec((1, gt_f, lt_stats), lambda n, g, l: (n, g, l))],
        out_specs=(pl.BlockSpec((1, gt_f, 1), lambda n, g, l: (n, g, 0)),
                   pl.BlockSpec((1, gt_f, 1), lambda n, g, l: (n, g, 0))),
        compiler_params=pltpu.CompilerParams(
            dimension_semantics=("parallel", "parallel", "arbitrary"),
            vmem_limit_bytes=_vmem_limit(fp_stats, vmem_cap),
        ),
    )(x_g)

    apply_k = functools.partial(_gn_apply_kernel, inv_l=1.0 / L, lt=lt_apply,
                                hw=hw, cpg=cpg, eps=eps)
    fp_apply = 4 * gt_f * lt_apply * itemsize + 5 * gt_f * lt_apply * 4
    out = pl.pallas_call(
        apply_k,
        out_shape=jax.ShapeDtypeStruct((N, G, L), x.dtype),
        grid=(N, G // gt_f, nl_apply),
        in_specs=[
            pl.BlockSpec((1, gt_f, lt_apply), lambda n, g, l: (n, g, l)),
            pl.BlockSpec((1, gt_f, 1), lambda n, g, l: (n, g, 0)),
            pl.BlockSpec((1, gt_f, 1), lambda n, g, l: (n, g, 0)),
            pl.BlockSpec((gt_f, cpg), lambda n, g, l: (g, 0)),
            pl.BlockSpec((gt_f, cpg), lambda n, g, l: (g, 0)),
        ],
        out_specs=pl.BlockSpec((1, gt_f, lt_apply), lambda n, g, l: (n, g, l)),
        compiler_params=pltpu.CompilerParams(
            dimension_semantics=("parallel", "parallel", "parallel"),
            vmem_limit_bytes=_vmem_limit(fp_apply, vmem_cap),
        ),
    )(x_g, ssum, ssq, w_g, b_g)
    return out.reshape(N, C, H, W)


def _reference_group_norm(x, weight, bias, num_groups, eps):
    N, C, H, W = x.shape
    xg = x.reshape(N, num_groups, -1).astype(jnp.float32)
    mean = jnp.mean(xg, axis=-1, keepdims=True)
    var = jnp.mean((xg - mean) ** 2, axis=-1, keepdims=True)
    y = ((xg - mean) / jnp.sqrt(var + eps)).reshape(N, C, H, W)
    return (y * weight.reshape(1, C, 1, 1) + bias.reshape(1, C, 1, 1)).astype(x.dtype)


if __name__ == "__main__":
    # Module config: num_features=64, num_groups=32 (default), eps=1e-5.
    num_features, num_groups, eps = 64, 32, 1e-5

    key = jax.random.PRNGKey(0)
    k0, k1, k2, k3 = jax.random.split(key, 4)

    # Parameters as initialized by the module (ones / zeros).  The
    # running_mean / running_var buffers are unused by the forward pass.
    weight = jnp.ones((num_features,), dtype=jnp.float32)
    bias = jnp.zeros((num_features,), dtype=jnp.float32)
    x = jax.random.normal(k0, (2, num_features, 8, 8), dtype=jnp.float32)

    y = jax.block_until_ready(group_norm(x, weight, bias, num_groups, eps))
    y_ref = _reference_group_norm(x, weight, bias, num_groups, eps)
    assert y.shape == x.shape and y.dtype == x.dtype
    assert np.allclose(np.asarray(y), np.asarray(y_ref), atol=1e-4, rtol=1e-4)

    # Resident path with a non-trivial affine (checks in-kernel expansion).
    w2 = jax.random.normal(k1, (num_features,), dtype=jnp.float32)
    b2 = jax.random.normal(k2, (num_features,), dtype=jnp.float32)
    y2 = jax.block_until_ready(group_norm(x, w2, b2, num_groups, eps))
    assert np.allclose(np.asarray(y2),
                       np.asarray(_reference_group_norm(x, w2, b2, num_groups, eps)),
                       atol=1e-4, rtol=1e-4)

    # L-tiled fallback (forced via a tiny block budget): L=260 is not a
    # multiple of 128 (masked tail chunk only) and channel boundaries fall
    # inside chunks; also exercises the 3-axis (N, G, L) fallback grid.
    xt = jax.random.normal(k3, (2, 8, 5, 13), dtype=jnp.float32)  # G=2, cpg=4
    wt = jax.random.normal(k1, (8,), dtype=jnp.float32)
    bt = jax.random.normal(k2, (8,), dtype=jnp.float32)
    yt = jax.block_until_ready(
        group_norm(xt, wt, bt, num_groups=2, eps=eps, max_block_bytes=1024))
    assert np.allclose(np.asarray(yt),
                       np.asarray(_reference_group_norm(xt, wt, bt, 2, eps)),
                       atol=1e-4, rtol=1e-4)

    print("KERNEL_OK")
</pallas_src>

<mosaic_0001>
module attributes {stable_mosaic.version = 11 : i64} {
  func.func @_gn_resident_kernel(%arg0: i32, %arg1: i32, %arg2: memref<2x16x128xf32, #tpu.memory_space<vmem>>, %arg3: memref<16x2xf32, #tpu.memory_space<vmem>>, %arg4: memref<16x2xf32, #tpu.memory_space<vmem>>, %arg5: memref<2x16x128xf32, #tpu.memory_space<vmem>>) attributes {dimension_semantics = [#tpu.dimension_semantics<parallel>, #tpu.dimension_semantics<parallel>], iteration_bounds = array<i64: 2, 1>, scalar_prefetch = 0 : i64, scratch_operands = 0 : i64, tpu.core_type = #tpu.core_type<tc>, window_params = [{transform_indices = @transform_0, window_bounds = array<i64: 2, 16, 128>}, {transform_indices = @transform_1, window_bounds = array<i64: 16, 2>}, {transform_indices = @transform_2, window_bounds = array<i64: 16, 2>}, {transform_indices = @transform_3, window_bounds = array<i64: 2, 16, 128>}]} {
    %c0 = arith.constant 0 : index
    %c0_0 = arith.constant 0 : index
    %c0_1 = arith.constant 0 : index
    %0 = vector.load %arg2[%c0, %c0_0, %c0_1] : memref<2x16x128xf32, #tpu.memory_space<vmem>>, vector<2x16x128xf32>
    %cst = arith.constant dense<0.000000e+00> : vector<2x16xf32>
    %1 = vector.multi_reduction <add>, %0, %cst [2] : vector<2x16x128xf32> to vector<2x16xf32>
    %2 = vector.shape_cast %1 : vector<2x16xf32> to vector<2x16x1xf32>
    %cst_2 = arith.constant 7.812500e-03 : f32
    %3 = vector.broadcast %cst_2 : f32 to vector<2x16x1xf32>
    %4 = arith.mulf %2, %3 : vector<2x16x1xf32>
    %5 = arith.mulf %0, %0 : vector<2x16x128xf32>
    %cst_3 = arith.constant dense<0.000000e+00> : vector<2x16xf32>
    %6 = vector.multi_reduction <add>, %5, %cst_3 [2] : vector<2x16x128xf32> to vector<2x16xf32>
    %7 = vector.shape_cast %6 : vector<2x16xf32> to vector<2x16x1xf32>
    %cst_4 = arith.constant 7.812500e-03 : f32
    %8 = vector.broadcast %cst_4 : f32 to vector<2x16x1xf32>
    %9 = arith.mulf %7, %8 : vector<2x16x1xf32>
    %10 = arith.mulf %4, %4 : vector<2x16x1xf32>
    %11 = arith.subf %9, %10 : vector<2x16x1xf32>
    %cst_5 = arith.constant 0.000000e+00 : f32
    %12 = vector.broadcast %cst_5 : f32 to vector<2x16x1xf32>
    %13 = arith.maximumf %11, %12 : vector<2x16x1xf32>
    %cst_6 = arith.constant 9.99999974E-6 : f32
    %14 = vector.broadcast %cst_6 : f32 to vector<2x16x1xf32>
    %15 = arith.addf %13, %14 : vector<2x16x1xf32>
    %16 = math.rsqrt %15 : vector<2x16x1xf32>
    %17 = tpu.iota {dimensions = array<i32: 1>} : vector<16x128xi32>
    %c0_7 = arith.constant 0 : index
    %c0_8 = arith.constant 0 : index
    %18 = vector.load %arg3[%c0_7, %c0_8] : memref<16x2xf32, #tpu.memory_space<vmem>>, vector<16x2xf32>
    %c0_9 = arith.constant 0 : index
    %c0_10 = arith.constant 0 : index
    %19 = vector.load %arg4[%c0_9, %c0_10] : memref<16x2xf32, #tpu.memory_space<vmem>>, vector<16x2xf32>
    %20 = vector.extract_strided_slice %18 {offsets = [0, 0], sizes = [16, 1], strides = [1, 1]} : vector<16x2xf32> to vector<16x1xf32>
    %21 = vector.shape_cast %20 : vector<16x1xf32> to vector<16x1xf32>
    %22 = vector.broadcast %21 : vector<16x1xf32> to vector<16x128xf32>
    %23 = vector.extract_strided_slice %19 {offsets = [0, 0], sizes = [16, 1], strides = [1, 1]} : vector<16x2xf32> to vector<16x1xf32>
    %24 = vector.shape_cast %23 : vector<16x1xf32> to vector<16x1xf32>
    %25 = vector.broadcast %24 : vector<16x1xf32> to vector<16x128xf32>
    %c64_i32 = arith.constant 64 : i32
    %26 = vector.broadcast %c64_i32 : i32 to vector<16x128xi32>
    %27 = arith.cmpi sge, %17, %26 : vector<16x128xi32>
    %28 = vector.extract_strided_slice %18 {offsets = [0, 1], sizes = [16, 1], strides = [1, 1]} : vector<16x2xf32> to vector<16x1xf32>
    %29 = vector.shape_cast %28 : vector<16x1xf32> to vector<16x1xf32>
    %30 = vector.broadcast %29 : vector<16x1xf32> to vector<16x128xf32>
    %31 = arith.select %27, %30, %22 : vector<16x128xi1>, vector<16x128xf32>
    %32 = vector.extract_strided_slice %19 {offsets = [0, 1], sizes = [16, 1], strides = [1, 1]} : vector<16x2xf32> to vector<16x1xf32>
    %33 = vector.shape_cast %32 : vector<16x1xf32> to vector<16x1xf32>
    %34 = vector.broadcast %33 : vector<16x1xf32> to vector<16x128xf32>
    %35 = arith.select %27, %34, %25 : vector<16x128xi1>, vector<16x128xf32>
    %36 = vector.broadcast %4 : vector<2x16x1xf32> to vector<2x16x128xf32>
    %37 = arith.subf %0, %36 : vector<2x16x128xf32>
    %38 = vector.broadcast %16 : vector<2x16x1xf32> to vector<2x16x128xf32>
    %39 = arith.mulf %37, %38 : vector<2x16x128xf32>
    %40 = vector.shape_cast %31 : vector<16x128xf32> to vector<1x16x128xf32>
    %41 = vector.broadcast %40 : vector<1x16x128xf32> to vector<2x16x128xf32>
    %42 = arith.mulf %39, %41 : vector<2x16x128xf32>
    %43 = vector.shape_cast %35 : vector<16x128xf32> to vector<1x16x128xf32>
    %44 = vector.broadcast %43 : vector<1x16x128xf32> to vector<2x16x128xf32>
    %45 = arith.addf %42, %44 : vector<2x16x128xf32>
    %c0_11 = arith.constant 0 : index
    %c0_12 = arith.constant 0 : index
    %c0_13 = arith.constant 0 : index
    %46 = vector.load %arg5[%c0_11, %c0_12, %c0_13] : memref<2x16x128xf32, #tpu.memory_space<vmem>>, vector<2x16x128xf32>
    tpu.vector_store %arg5[%c0_11, %c0_12, %c0_13], %45 {strides = array<i32>} : memref<2x16x128xf32, #tpu.memory_space<vmem>>, vector<2x16x128xf32>,
    return
  }
  func.func @transform_0(%arg0: i32, %arg1: i32) -> (i32, i32, i32) {
    %c0_i32 = arith.constant 0 : i32
    %c0_i32_0 = arith.constant 0 : i32
    return %arg1, %arg0, %c0_i32 : i32, i32, i32
  }
  func.func @transform_1(%arg0: i32, %arg1: i32) -> (i32, i32) {
    %c0_i32 = arith.constant 0 : i32
    %c0_i32_0 = arith.constant 0 : i32
    return %arg0, %c0_i32 : i32, i32
  }
  func.func @transform_2(%arg0: i32, %arg1: i32) -> (i32, i32) {
    %c0_i32 = arith.constant 0 : i32
    %c0_i32_0 = arith.constant 0 : i32
    return %arg0, %c0_i32 : i32, i32
  }
  func.func @transform_3(%arg0: i32, %arg1: i32) -> (i32, i32, i32) {
    %c0_i32 = arith.constant 0 : i32
    %c0_i32_0 = arith.constant 0 : i32
    return %arg1, %arg0, %c0_i32 : i32, i32, i32
  }
}

</mosaic_0001>

<llo_original>
// kernel: tpu_custom_call.1
$region0: #{tpu_custom_call.1}
  #allocation0 [shape = 'u32[]', space=smem, size = 0x4, offset = 0x4, fixed_abs, tag = 'smem constant byte address 0x4 - core index']
  #allocation1 [shape = 'u32[144,128]{1,0:T(1,128)}', space=vmem, size = 0x12000, scoped, tag = 'internal scratch']
  #allocation5 [shape = 's32[]', space=sflag, size = 0x4, offset = 0, fixed_abs, tag = 'sflag constant byte address 0x0 - dummy sync flag']
  %s0 = inlined_call_operand.vmem [shape: f32[2,32,128], index: 0, kind: input, shape index: {}]
  %s1 = inlined_call_operand.vmem [shape: f32[32,2], index: 1, kind: input, shape index: {}]
  %s2 = inlined_call_operand.vmem [shape: f32[32,2], index: 2, kind: input, shape index: {}]
  %s3 = inlined_call_operand.hbm [shape: f32[2,32,128], index: 3, kind: output, shape index: {}]
  %s4 = sld [smem:[#allocation0]]
  $region83: #{tpu_custom_call.1} parent=0
    _
  %s6 = ssub.s32 1, %s4
  %s7 = scalar_select 0, %s6, %s4
  $region1: #{tpu_custom_call.1} parent=0
    #allocation2 [shape = 'u8[32768]{0}', space=vmem, size = 0x8000, scoped, tag = 'input window, operand 0']
    #allocation3 [shape = 'u8[32768]{0}', space=vmem, size = 0x8000, scoped, tag = 'output window, operand 0']
    #allocation4 [shape = 's32[2]{0}', space=sflag, size = 0x8, scoped, tag = 'scoped memory for tpu_custom_call.1']
    %8 = vsyncpa [#allocation4], 0
    %s9 = scalar_lea.sflag [#allocation4], 1
    %10 = vsyncpa %s9, 0
    loop: start=0, step=1, limit=4
    $region2: #{tpu_custom_call.1} parent=1 // loop_pre_header
      _
    $region3: #{tpu_custom_call.1} parent=1 // loop_header
      %s12 = sphi 0, %s16
      %p13 = scmp.ge.s32.totalorder %s12, 4
      %s19 = sphi 0, %s31
      %s20 = sphi 0, %s27
      %s21 = sphi 0, %s19
      %s22 = sphi 0, %s20
      %s23 = sphi 0, %s21
      %s24 = sphi 0, %s22
      %s36 = sphi 0, %s38
      %s39 = sphi 0, %s36
      %s40 = sphi 0, %s39
      %s56 = sphi 0, %s40
      %s62 = sphi 0, %s64
      %s65 = sphi 0, %s62
      %s66 = sphi 0, %s65
      %s82 = sphi 0, %s66
      %s88 = sphi 0, %s90
      %s91 = sphi 0, %s88
      %s92 = sphi 0, %s91
      %s108 = sphi 0, %s92
      %s116 = sphi 0, %s118
      %s119 = sphi 0, %s116
      %s120 = sphi 0, %s119
      %s136 = sphi 0, %s120
    $region4: #{tpu_custom_call.1} parent=1 // loop_header_branch
      %15 = sbr.rel (%p13) target = $region8
    $region5: #{tpu_custom_call.1} parent=1 // loop_body
      %s17 = ssub.s32 %s12, 1
      %s18 = ssub.s32 %s12, 2
      %s25 = sadd.s32 1, %s20
      %p26 = scmp.ge.s32.totalorder %s25, 1
      %s27 = scalar_select %p26, 0, %s25
      %s28 = sadd.s32 1, %s19
      %s29 = scalar_select %p26, %s28, %s19
      %p30 = scmp.ge.s32.totalorder %s29, 2
      %s31 = scalar_select %p30, 0, %s29
      %s32 = ssub.s32 %s20, %s27
      %s33 = ssub.s32 %s19, %s31
      %s34 = sor.u32 %s32, %s33
      %p35 = scmp.eq.s32.totalorder %s34, 0
      %s37 = sadd.s32 %s36, 1
      %s38 = scalar_select %p35, %s36, %s37
      %p41 = pneg %p35
      %p42 = scmp.eq.s32.totalorder %s12, 1
      %p43 = por %p41, %p42
      %p44 = scmp.ne.s32.totalorder %s36, %s39
      %p45 = scmp.eq.s32.totalorder %s12, 0
      %p46 = por %p44, %p45
      %p47 = scmp.ne.s32.totalorder %s36, %s39
      %p48 = scmp.eq.s32.totalorder %s17, 1
      %p49 = por %p47, %p48
      %p50 = scmp.ne.s32.totalorder %s39, %s40
      %p51 = scmp.eq.s32.totalorder %s17, 0
      %p52 = por %p50, %p51
      %p53 = scmp.ne.s32.totalorder %s39, %s40
      %p54 = scmp.eq.s32.totalorder %s18, 1
      %p55 = por %p53, %p54
      %p57 = scmp.ne.s32.totalorder %s40, %s56
      %p58 = scmp.eq.s32.totalorder %s18, 0
      %p59 = por %p57, %p58
      %s60 = ssub.s32 %s19, %s31
      %p61 = scmp.eq.s32.totalorder %s60, 0
      %s63 = sadd.s32 %s62, 1
      %s64 = scalar_select %p61, %s62, %s63
      %p67 = pneg %p61
      %p68 = scmp.eq.s32.totalorder %s12, 1
      %p69 = por %p67, %p68
      %p70 = scmp.ne.s32.totalorder %s62, %s65
      %p71 = scmp.eq.s32.totalorder %s12, 0
      %p72 = por %p70, %p71
      %p73 = scmp.ne.s32.totalorder %s62, %s65
      %p74 = scmp.eq.s32.totalorder %s17, 1
      %p75 = por %p73, %p74
      %p76 = scmp.ne.s32.totalorder %s65, %s66
      %p77 = scmp.eq.s32.totalorder %s17, 0
      %p78 = por %p76, %p77
      %p79 = scmp.ne.s32.totalorder %s65, %s66
      %p80 = scmp.eq.s32.totalorder %s18, 1
      %p81 = por %p79, %p80
      %p83 = scmp.ne.s32.totalorder %s66, %s82
      %p84 = scmp.eq.s32.totalorder %s18, 0
      %p85 = por %p83, %p84
      %s86 = ssub.s32 %s19, %s31
      %p87 = scmp.eq.s32.totalorder %s86, 0
      %s89 = sadd.s32 %s88, 1
      %s90 = scalar_select %p87, %s88, %s89
      %p93 = pneg %p87
      %p94 = scmp.eq.s32.totalorder %s12, 1
      %p95 = por %p93, %p94
      %p96 = scmp.ne.s32.totalorder %s88, %s91
      %p97 = scmp.eq.s32.totalorder %s12, 0
      %p98 = por %p96, %p97
      %p99 = scmp.ne.s32.totalorder %s88, %s91
      %p100 = scmp.eq.s32.totalorder %s17, 1
      %p101 = por %p99, %p100
      %p102 = scmp.ne.s32.totalorder %s91, %s92
      %p103 = scmp.eq.s32.totalorder %s17, 0
      %p104 = por %p102, %p103
      %p105 = scmp.ne.s32.totalorder %s91, %s92
      %p106 = scmp.eq.s32.totalorder %s18, 1
      %p107 = por %p105, %p106
      %p109 = scmp.ne.s32.totalorder %s92, %s108
      %p110 = scmp.eq.s32.totalorder %s18, 0
      %p111 = por %p109, %p110
      %s112 = ssub.s32 %s20, %s27
      %s113 = ssub.s32 %s19, %s31
      %s114 = sor.u32 %s112, %s113
      %p115 = scmp.eq.s32.totalorder %s114, 0
      %s117 = sadd.s32 %s116, 1
      %s118 = scalar_select %p115, %s116, %s117
      %p121 = pneg %p115
      %p122 = scmp.eq.s32.totalorder %s12, 1
      %p123 = por %p121, %p122
      %p124 = scmp.ne.s32.totalorder %s116, %s119
      %p125 = scmp.eq.s32.totalorder %s12, 0
      %p126 = por %p124, %p125
      %p127 = scmp.ne.s32.totalorder %s116, %s119
      %p128 = scmp.eq.s32.totalorder %s17, 1
      %p129 = por %p127, %p128
      %p130 = scmp.ne.s32.totalorder %s119, %s120
      %p131 = scmp.eq.s32.totalorder %s17, 0
      %p132 = por %p130, %p131
      %p133 = scmp.ne.s32.totalorder %s119, %s120
      %p134 = scmp.eq.s32.totalorder %s18, 1
      %p135 = por %p133, %p134
      %p137 = scmp.ne.s32.totalorder %s120, %s136
      %p138 = scmp.eq.s32.totalorder %s18, 0
      %p139 = por %p137, %p138
      %p140 = scmp.le.s32.totalorder 1, %s12
      %p141 = scmp.lt.s32.totalorder %s12, 3
      %p142 = pnand %p140, %p141
      %p143 = pneg %p142
      // Predicated region
      $region9: #{tpu_custom_call.1} parent=5 // pred_check
        _
      $region10: #{tpu_custom_call.1} parent=5 // pred_check_branch
        %145 = sbr.rel (%p142) target = $region12
      $region11: #{tpu_custom_call.1} parent=5 // pred_region
        %s146 = ssub.s32 %s12, 1
      $region12: #{tpu_custom_call.1} parent=5 // pred_fallthru
        _
      %p147 = scmp.lt.s32.totalorder %s12, 2
      // Predicated region
      $region13: #{tpu_custom_call.1} parent=5 // pred_check
        %p148 = pneg %p147
      $region14: #{tpu_custom_call.1} parent=5 // pred_check_branch
        %150 = sbr.rel (%p148) target = $region16
      $region15: #{tpu_custom_call.1} parent=5 // pred_region
        // Predicated region
        $region17: #{tpu_custom_call.1} parent=15 // pred_check
          %p151 = pneg %p46
        $region18: #{tpu_custom_call.1} parent=15 // pred_check_branch
          %153 = sbr.rel (%p151) target = $region20
        $region19: #{tpu_custom_call.1} parent=15 // pred_region
          %s154 = sand.u32 %s36, 1
          %s155 = sand.u32 %s36, 1
          %s156 = smul.addr %s155, 32
          %s157 = scalar_lea.vmem [#allocation2], %s156
          %s158 = smul.u32 2, %s20
          %s159 = smul.u32 2, %s19
          %s160 = smul.addr %s158, 4
          %s161 = sadd.s32 %s159, %s160
          %s162 = smul.addr %s161, 8
          %s163 = scalar_lea.vmem %s0, %s162
          // Predicated region
          $region21: #{tpu_custom_call.1} parent=19 // pred_check
            _
          $region22: #{tpu_custom_call.1} parent=19 // pred_check_branch
            %165 = sbr.rel (0) target = $region24
          $region23: #{tpu_custom_call.1} parent=19 // pred_region
            // Predicated region
            $region25: #{tpu_custom_call.1} parent=23 // pred_check
              _
            $region26: #{tpu_custom_call.1} parent=23 // pred_check_branch
              %167 = sbr.rel (0) target = $region28
            $region27: #{tpu_custom_call.1} parent=23 // pred_region
              // Predicated region
              $region40: #{tpu_custom_call.1} parent=27 // pred_check
                _
              $region41: #{tpu_custom_call.1} parent=27 // pred_check_branch
                %188 = sbr.rel (0) target = $region43
              $region42: #{tpu_custom_call.1} parent=27 // pred_region
                loop: start=0, step=1, limit=1
                $region44: #{tpu_custom_call.1} parent=42 // loop_pre_header
                  _
                $region45: #{tpu_custom_call.1} parent=42 // loop_header
                  %s190 = sphi 0, %s194
                  %p191 = scmp.ge.s32.totalorder %s190, 1
                  %s195 = sphi %s163, %s163
                  %s196 = sphi %s157, %s157
                $region46: #{tpu_custom_call.1} parent=42 // loop_header_branch
                  %193 = sbr.rel (%p191) target = $region50
                $region47: #{tpu_custom_call.1} parent=42 // loop_body
                  %v197 = vld [vmem:[%s195] sm:$0xff]
                  %198 = vst [vmem:[%s196] sm:$0xff] %v197
                  %v199 = vld [vmem:[%s195 + $0x8] sm:$0xff]
                  %200 = vst [vmem:[%s196 + $0x8] sm:$0xff] %v199
                  %v201 = vld [vmem:[%s195 + $0x20] sm:$0xff]
                  %202 = vst [vmem:[%s196 + $0x10] sm:$0xff] %v201
                  %v203 = vld [vmem:[%s195 + $0x28] sm:$0xff]
                  %204 = vst [vmem:[%s196 + $0x18] sm:$0xff] %v203
                $region48: #{tpu_custom_call.1} parent=42 // loop_footer
                  %s194 = sadd.s32 1, %s190
                $region49: #{tpu_custom_call.1} parent=42 // loop_footer_branch
                  %189 = sbr.rel target = $region45
                $region50: #{tpu_custom_call.1} parent=42 // loop_exit
                  _
              $region43: #{tpu_custom_call.1} parent=27 // pred_fallthru
                _
              // Predicated region
              $region51: #{tpu_custom_call.1} parent=27 // pred_check
                _
              $region52: #{tpu_custom_call.1} parent=27 // pred_check_branch
                %206 = sbr.rel target = $region54
              $region53: #{tpu_custom_call.1} parent=27 // pred_region
                _
              $region54: #{tpu_custom_call.1} parent=27 // pred_fallthru
                _
            $region28: #{tpu_custom_call.1} parent=23 // pred_fallthru
              _
            // Predicated region
            $region29: #{tpu_custom_call.1} parent=23 // pred_check
              _
            $region30: #{tpu_custom_call.1} parent=23 // pred_check_branch
              %169 = sbr.rel target = $region32
            $region31: #{tpu_custom_call.1} parent=23 // pred_region
              loop: start=0, step=1, limit=1
              $region33: #{tpu_custom_call.1} parent=31 // loop_pre_header
                _
              $region34: #{tpu_custom_call.1} parent=31 // loop_header
                %s172 = sphi 0, %s176
                %p173 = scmp.ge.s32.totalorder %s172, 1
                %s177 = sphi %s163, %s163
                %s178 = sphi %s157, %s157
              $region35: #{tpu_custom_call.1} parent=31 // loop_header_branch
                %175 = sbr.rel (%p173) target = $region39
              $region36: #{tpu_custom_call.1} parent=31 // loop_body
                %v179 = vld [vmem:[%s177] sm:$0xff]
                %180 = vst [vmem:[%s178] sm:$0xff] %v179
                %v181 = vld [vmem:[%s177 + $0x8] sm:$0xff]
                %182 = vst [vmem:[%s178 + $0x8] sm:$0xff] %v181
                %v183 = vld [vmem:[%s177 + $0x20] sm:$0xff]
                %184 = vst [vmem:[%s178 + $0x10] sm:$0xff] %v183
                %v185 = vld [vmem:[%s177 + $0x28] sm:$0xff]
                %186 = vst [vmem:[%s178 + $0x18] sm:$0xff] %v185
              $region37: #{tpu_custom_call.1} parent=31 // loop_footer
                %s176 = sadd.s32 1, %s172
              $region38: #{tpu_custom_call.1} parent=31 // loop_footer_branch
                %171 = sbr.rel target = $region34
              $region39: #{tpu_custom_call.1} parent=31 // loop_exit
                _
            $region32: #{tpu_custom_call.1} parent=23 // pred_fallthru
              _
          $region24: #{tpu_custom_call.1} parent=19 // pred_fallthru
            _
          %207 = vnop
        $region20: #{tpu_custom_call.1} parent=15 // pred_fallthru
          _
        // Predicated region
        $region55: #{tpu_custom_call.1} parent=15 // pred_check
          %p208 = pneg %p72
        $region56: #{tpu_custom_call.1} parent=15 // pred_check_branch
          %210 = sbr.rel (%p208) target = $region58
        $region57: #{tpu_custom_call.1} parent=15 // pred_region
          %s211 = smul.u32 2, %s19
          %p212 = scmp.lt.s32.totalorder %s211, 3
          %s213 = scalar_select %p212, %s211, 3
          %s214 = smul.addr %s213, 8
          %s215 = scalar_lea.vmem %s1, %s214
          %s216 = smul.u32 2, %s19
        $region58: #{tpu_custom_call.1} parent=15 // pred_fallthru
          _
        // Predicated region
        $region59: #{tpu_custom_call.1} parent=15 // pred_check
          %p217 = pneg %p98
        $region60: #{tpu_custom_call.1} parent=15 // pred_check_branch
          %219 = sbr.rel (%p217) target = $region62
        $region61: #{tpu_custom_call.1} parent=15 // pred_region
          %s220 = smul.u32 2, %s19
          %p221 = scmp.lt.s32.totalorder %s220, 3
          %s222 = scalar_select %p221, %s220, 3
          %s223 = smul.addr %s222, 8
          %s224 = scalar_lea.vmem %s2, %s223
          %s225 = smul.u32 2, %s19
        $region62: #{tpu_custom_call.1} parent=15 // pred_fallthru
          _
      $region16: #{tpu_custom_call.1} parent=5 // pred_fallthru
        _
      %p226 = scmp.le.s32.totalorder 1, %s12
      %p227 = scmp.lt.s32.totalorder %s12, 3
      %p228 = pnand %p226, %p227
      %p229 = pneg %p228
      // Predicated region
      $region63: #{tpu_custom_call.1} parent=5 // pred_check
        _
      $region64: #{tpu_custom_call.1} parent=5 // pred_check_branch
        %231 = sbr.rel (%p228) target = $region66
      $region65: #{tpu_custom_call.1} parent=5 // pred_region
        %s232 = ssub.s32 %s12, 1
        %s233 = sand.u32 %s39, 1
        %s234 = sand.u32 %s39, 1
        %s235 = smul.addr %s234, 32
        %s236 = scalar_lea.vmem [#allocation2], %s235
        // Predicated region
        $region67: #{tpu_custom_call.1} parent=65 // pred_check
          %p237 = pneg %p52
        $region68: #{tpu_custom_call.1} parent=65 // pred_check_branch
          %239 = sbr.rel (%p237) target = $region70
        $region69: #{tpu_custom_call.1} parent=65 // pred_region
          _
        $region70: #{tpu_custom_call.1} parent=65 // pred_fallthru
          _
        %s240 = sand.u32 %s39, 1
        %s241 = sand.u32 %s39, 1
        %s242 = smul.addr %s241, 32
        %s243 = scalar_lea.vmem [#allocation2], %s242
        %p244 = pneg %p52
        %p245 = pneg %p49
        %s246 = smul.u32 2, %s21
        %p247 = scmp.lt.s32.totalorder %s246, 3
        %s248 = scalar_select %p247, %s246, 3
        %s249 = smul.addr %s248, 8
        %s250 = scalar_lea.vmem %s1, %s249
        %p251 = pneg %p78
        %p252 = pneg %p75
        %s253 = smul.u32 2, %s21
        %p254 = scmp.lt.s32.totalorder %s253, 3
        %s255 = scalar_select %p254, %s253, 3
        %s256 = smul.addr %s255, 8
        %s257 = scalar_lea.vmem %s2, %s256
        %p258 = pneg %p104
        %p259 = pneg %p101
        %p260 = pneg %p132
        %p261 = pneg %p129
        %s262 = sand.u32 %s119, 1
        %s263 = scalar_lea.sflag [#allocation4], %s262
        %s264 = sand.u32 %s119, 1
        %s265 = smul.addr %s264, 32
        %s266 = scalar_lea.vmem [#allocation3], %s265
        %s267 = smul.u32 2, %s22
        %s268 = smul.u32 2, %s21
        %s269 = smul.u32 2, %s21
        %p270 = scmp.lt.s32.totalorder %s269, 3
        %s271 = scalar_select %p270, %s269, 3
        %s272 = smul.addr %s271, 8
        %s273 = scalar_lea.vmem %s1, %s272
        %s274 = smul.u32 2, %s21
        %s275 = smul.u32 2, %s21
        %p276 = scmp.lt.s32.totalorder %s275, 3
        %s277 = scalar_select %p276, %s275, 3
        %s278 = smul.addr %s277, 8
        %s279 = scalar_lea.vmem %s2, %s278
        %s280 = smul.u32 2, %s21
        %s281 = smul.u32 2, %s22
        %s282 = smul.u32 2, %s21
        %v283 = vld [vmem:[%s236] sm:$0xff]
        %v284 = vld [vmem:[%s236 + $0x8] sm:$0xff]
        %v285 = vld [vmem:[%s236 + $0x10] sm:$0xff]
        %v286 = vld [vmem:[%s236 + $0x18] sm:$0xff]
        %287 = vadd.xlane.f32.xlu0 %v283
        %v288 = vpop.xlane.xlu0 %287
        %289 = vadd.xlane.f32.xlu0 %v284
        %v290 = vpop.xlane.xlu0 %289
        %291 = vadd.xlane.f32.xlu0 %v285
        %v292 = vpop.xlane.xlu0 %291
        %293 = vadd.xlane.f32.xlu0 %v286
        %v294 = vpop.xlane.xlu0 %293
        %v295 = vmul.f32 %v288, 0.0078125
        %v296 = vmul.f32 %v290, 0.0078125
        %v297 = vmul.f32 %v292, 0.0078125
        %v298 = vmul.f32 %v294, 0.0078125
        %v299 = vmul.f32 %v283, %v283
        %v300 = vmul.f32 %v284, %v284
        %v301 = vmul.f32 %v285, %v285
        %v302 = vmul.f32 %v286, %v286
        %303 = vadd.xlane.f32.xlu0 %v299
        %v304 = vpop.xlane.xlu0 %303
        %305 = vadd.xlane.f32.xlu0 %v300
        %v306 = vpop.xlane.xlu0 %305
        %307 = vadd.xlane.f32.xlu0 %v301
        %v308 = vpop.xlane.xlu0 %307
        %309 = vadd.xlane.f32.xlu0 %v302
        %v310 = vpop.xlane.xlu0 %309
        %v311 = vmul.f32 %v304, 0.0078125
        %v312 = vmul.f32 %v306, 0.0078125
        %v313 = vmul.f32 %v308, 0.0078125
        %v314 = vmul.f32 %v310, 0.0078125
        %v315 = vmul.f32 %v295, %v295
        %v316 = vmul.f32 %v296, %v296
        %v317 = vmul.f32 %v297, %v297
        %v318 = vmul.f32 %v298, %v298
        %v319 = vsub.f32 %v311, %v315
        %v320 = vsub.f32 %v312, %v316
        %v321 = vsub.f32 %v313, %v317
        %v322 = vsub.f32 %v314, %v318
        %v323 = vmax.f32 %v319, 0.0
        %v324 = vmax.f32 %v320, 0.0
        %v325 = vmax.f32 %v321, 0.0
        %v326 = vmax.f32 %v322, 0.0
        %v327 = vadd.f32 %v323, 1e-05
        %v328 = vadd.f32 %v324, 1e-05
        %v329 = vadd.f32 %v325, 1e-05
        %v330 = vadd.f32 %v326, 1e-05
        %v331 = vrsqrt.pop %v327
        %v332 = vrsqrt.pop %v328
        %v333 = vrsqrt.pop %v329
        %v334 = vrsqrt.pop %v330
        %v335 = vlaneseq
        %v336 = vand.u32 %v335, 127
        %v337 = vld [vmem:[%s273] sm:$0xff]
        %v338 = vld [vmem:[%s273 + $0x8] sm:$0xff]
        %v339 = vld [vmem:[%s279] sm:$0xff]
        %v340 = vld [vmem:[%s279 + $0x8] sm:$0xff]
        %342 = vset.pattern.permute.xlu0 0
        %343 = vperm.xlu0 %342, %v337
        %v344 = vpop.permute.xlu0 %343
        %347 = vset.pattern.permute.xlu0 0
        %348 = vperm.xlu0 %347, %v338
        %v349 = vpop.permute.xlu0 %348
        %352 = vset.pattern.permute.xlu0 0
        %353 = vperm.xlu0 %352, %v339
        %v354 = vpop.permute.xlu0 %353
        %357 = vset.pattern.permute.xlu0 0
        %358 = vperm.xlu0 %357, %v340
        %v359 = vpop.permute.xlu0 %358
        %vm361 = vcmp.ge.s32.totalorder %v336, 64
        %362 = vset.pattern.permute.xlu0 1
        %363 = vperm.xlu0 %362, %v337
        %v364 = vpop.permute.xlu0 %363
        %366 = vset.pattern.permute.xlu0 1
        %367 = vperm.xlu0 %366, %v338
        %v368 = vpop.permute.xlu0 %367
        %v370 = vsel %vm361, %v364, %v344
        %v371 = vsel %vm361, %v368, %v349
        %372 = vset.pattern.permute.xlu0 1
        %373 = vperm.xlu0 %372, %v339
        %v374 = vpop.permute.xlu0 %373
        %376 = vset.pattern.permute.xlu0 1
        %377 = vperm.xlu0 %376, %v340
        %v378 = vpop.permute.xlu0 %377
        %v380 = vsel %vm361, %v374, %v354
        %v381 = vsel %vm361, %v378, %v359
        %v382 = vsub.f32 %v283, %v295
        %v383 = vsub.f32 %v284, %v296
        %v384 = vsub.f32 %v285, %v297
        %v385 = vsub.f32 %v286, %v298
        %v386 = vmul.f32 %v382, %v331
        %v387 = vmul.f32 %v383, %v332
        %v388 = vmul.f32 %v384, %v333
        %v389 = vmul.f32 %v385, %v334
        %v390 = vmul.f32 %v386, %v370
        %v391 = vmul.f32 %v387, %v371
        %v392 = vmul.f32 %v388, %v370
        %v393 = vmul.f32 %v389, %v371
        %v394 = vadd.f32 %v390, %v380
        %v395 = vadd.f32 %v391, %v381
        %v396 = vadd.f32 %v392, %v380
        %v397 = vadd.f32 %v393, %v381
        %398 = vst [vmem:[%s266] sm:$0xff] %v394
        %399 = vst [vmem:[%s266 + $0x8] sm:$0xff] %v395
        %400 = vst [vmem:[%s266 + $0x10] sm:$0xff] %v396
        %401 = vst [vmem:[%s266 + $0x18] sm:$0xff] %v397
        %s402 = sand.u32 %s119, 1
        %s403 = scalar_lea.sflag [#allocation4], %s402
        %s404 = sand.u32 %s119, 1
        %s405 = smul.addr %s404, 32
        %s406 = scalar_lea.vmem [#allocation3], %s405
        // Predicated region
        $region71: #{tpu_custom_call.1} parent=65 // pred_check
          %p407 = pneg %p129
        $region72: #{tpu_custom_call.1} parent=65 // pred_check_branch
          %409 = sbr.rel (%p407) target = $region74
        $region73: #{tpu_custom_call.1} parent=65 // pred_region
          #allocation6 [shape = 'u32[6]{0}', space=smem, size = 0x18, scoped, tag = 'DMA stride descriptor']
          %s410 = smul.u32 2, %s22
          %s411 = smul.u32 2, %s21
          %s413 = ssub.s32 512, 512
          %414 = vsyncadd %s403, %s413
          %s415 = smul.addr %s410, 4
          %s416 = sadd.s32 %s411, %s415
          %s417 = smul.addr %s416, 128
          %s418 = scalar_lea.hbm %s3, %s417
          %s420 = sshll.u32 1, 14
          %s421 = sxor.u32 4294967295, %s420
          %s424 = sshll.u32 7, 18
          %s425 = sxor.u32 4294967295, %s424
          %s426 = sand.u32 0, %s425
          %s428 = sor.u32 %s426, 0
          %s430 = sshll.u32 3, 24
          %s431 = sxor.u32 4294967295, %s430
          %s432 = sand.u32 %s428, %s431
          %s434 = sor.u32 %s432, 0
          %s435 = sshll.u32 %s406, 4
          %s436 = int_to_ptr.vmem [resolvable:$true] %s435
          %442 = sst [smem:[#allocation6]] 256
          %s443 = scalar_lea.smem [#allocation6], 1
          %444 = sst [smem:[%s443]] 512
          %s445 = scalar_lea.smem [#allocation6], 2
          %446 = sst [smem:[%s445]] 2
          %s447 = scalar_lea.smem [#allocation6], 3
          %448 = sst [smem:[%s447]] 128
          %s449 = scalar_lea.smem [#allocation6], 4
          %450 = sst [smem:[%s449]] 128
          %s451 = scalar_lea.smem [#allocation6], 5
          %452 = sst [smem:[%s451]] 8
          %454 = dma.general %s436, 512, %s418, %s403, [#allocation5], [#allocation6], %s434, 0
        $region74: #{tpu_custom_call.1} parent=65 // pred_fallthru
          _
      $region66: #{tpu_custom_call.1} parent=5 // pred_fallthru
        _
      %p455 = scmp.le.s32.totalorder 2, %s12
      // Predicated region
      $region75: #{tpu_custom_call.1} parent=5 // pred_check
        %p456 = pneg %p455
      $region76: #{tpu_custom_call.1} parent=5 // pred_check_branch
        %458 = sbr.rel (%p456) target = $region78
      $region77: #{tpu_custom_call.1} parent=5 // pred_region
        %s459 = ssub.s32 %s12, 2
        // Predicated region
        $region79: #{tpu_custom_call.1} parent=77 // pred_check
          %p460 = pneg %p135
        $region80: #{tpu_custom_call.1} parent=77 // pred_check_branch
          %462 = sbr.rel (%p460) target = $region82
        $region81: #{tpu_custom_call.1} parent=77 // pred_region
          %s463 = sand.u32 %s120, 1
          %s464 = scalar_lea.sflag [#allocation4], %s463
          %s465 = sand.u32 %s120, 1
          %s466 = smul.addr %s465, 32
          %s467 = scalar_lea.vmem [#allocation3], %s466
          %468 = dma.done %s464, 512
        $region82: #{tpu_custom_call.1} parent=77 // pred_fallthru
          _
      $region78: #{tpu_custom_call.1} parent=5 // pred_fallthru
        _
    $region6: #{tpu_custom_call.1} parent=1 // loop_footer
      %s16 = sadd.s32 1, %s12
    $region7: #{tpu_custom_call.1} parent=1 // loop_footer_branch
      %11 = sbr.rel target = $region3
    $region8: #{tpu_custom_call.1} parent=1 // loop_exit
      _
    %469 = vsyncpa [#allocation4], 1
    %s470 = scalar_lea.sflag [#allocation4], 1
    %471 = vsyncpa %s470, 1

</llo_original>
